<compile_context>
chip_gen: v6e
topology: v6e:2x2x1
jax: 0.10.0
libtpu: 0.0.40
codegen_flags: <defaults>
</compile_context>

<pallas_src>
import functools

import jax
import jax.numpy as jnp
import numpy as np
from jax.experimental import pallas as pl
from jax.experimental.pallas import tpu as pltpu


def mgnet_head_kernel(x_ref, w1_ref, b_ref, w2_ref, m_ref, o_ref, p_ref, *, W):
    """One grid step = NB batch elements, channels-first, lane-dense.

    x_ref:  (NB, Cin, H*W)   input pixels, lane axis = h*W + w
    w1_ref: (Ch, 9*Cin)      3x3 conv weights, BN scale folded (tap-major, chan-minor)
    b_ref:  (Ch, 1)          folded BN bias (f32)
    w2_ref: (NclsP, Ch)      1x1 predictor weights, zero-padded to a sublane multiple
    m_ref:  (9, 1, H*W)      per-tap 'same'-padding boundary masks (0/1, f32)
    o_ref:  (NB, NclsP, H*W) output (f32), NCHW-contiguous
    p_ref:  (9*Cin, NB*H*W)  VMEM scratch: im2col patch matrix built in-kernel
    """
    NB, Cin, HW = x_ref.shape

    # Tap ordering t = (dh+1)*3 + (dw+1) == kh*3 + kw matches the weight reshape.
    shifts = [dh * W + dw for dh in (-1, 0, 1) for dw in (-1, 0, 1)]
    masks = m_ref[...]                                 # (9, 1, HW), loaded once

    # Build the patch matrix in VMEM:
    #   patches[t*Cin + c, b*HW + p] = x[b, c, p + shift_t]  (0 outside the image).
    # A lane roll wraps across rows / batch elements, but every wrapped position is
    # exactly one the boundary mask zeroes, so roll + mask is an exact zero-padded
    # 'same' im2col.  All in-VMEM work (XLU roll + VPU mul) replacing HBM traffic.
    for b in range(NB):                                # static, NB <= 2
        xb = x_ref[b].astype(jnp.float32)              # (Cin, HW); roll/mask in f32
        for t, shift in enumerate(shifts):
            if shift == 0:                             # center tap: no shift, no mask
                v = xb
            else:
                v = pltpu.roll(xb, shift=(-shift) % HW, axis=1) * masks[t]
            p_ref[t * Cin:(t + 1) * Cin, b * HW:(b + 1) * HW] = v.astype(p_ref.dtype)

    # 3x3 conv (+ folded BN scale) as ONE MXU matmul: (Ch, 9Cin) x (9Cin, NB*HW).
    y = jnp.dot(w1_ref[...], p_ref[...], preferred_element_type=jnp.float32)

    # InPlaceABNSync (eval): folded bias add + leaky_relu(0.01), in f32.
    y = y + b_ref[...]
    y = jnp.where(y > 0, y, 0.01 * y)

    # 1x1 predictor conv: (NclsP, Ch) x (Ch, NB*HW), f32 accumulation.
    z = jnp.dot(w2_ref[...], y.astype(w2_ref.dtype), preferred_element_type=jnp.float32)

    # Per-batch lane-aligned stores keep the output NCHW-contiguous (free reshape).
    for b in range(NB):
        o_ref[b] = z[:, b * HW:(b + 1) * HW].astype(o_ref.dtype)


def _default_grid_blocks(n_batch: int) -> int:
    """v7x has 2 TensorCores/chip -> shard the batch across them; single-TC chips
    (v5e/v6e) get ONE wide grid step (the ~0.35us/step pipeline overhead would
    otherwise rival the entire compute at these shapes)."""
    try:
        kind = jax.devices()[0].device_kind.lower()
    except Exception:
        return 1
    if ("v7" in kind or "7x" in kind) and n_batch % 2 == 0:
        return 2
    # TODO(synk): for v7x with odd/unit batch, shard over HW lane-tiles instead of N.
    return 1


def mgnet_head_forward(x_nchw, w1_oihw, gamma, beta, mean, var, w2_oihw,
                       eps=1e-5, use_bf16=True, num_grid_blocks=None):
    """NCHW in / NCHW out.  Eval-mode BN folded into the 3x3 weights + f32 bias."""
    N, Cin, H, W = x_nchw.shape
    Ch = w1_oihw.shape[0]
    Ncls = w2_oihw.shape[0]
    HW = H * W
    K = 9 * Cin
    NclsP = ((Ncls + 7) // 8) * 8                      # pad classes to sublane multiple

    G = _default_grid_blocks(N) if num_grid_blocks is None else num_grid_blocks
    if N % G != 0:
        G = 1
    NB = N // G

    cdt = jnp.bfloat16 if use_bf16 else jnp.float32

    # Free metadata reshape of the contiguous NCHW input; only the cast touches HBM
    # (in production the activations would already be bf16 and this fuses away).
    x_in = x_nchw.reshape(N, Cin, HW).astype(cdt)

    # Fold eval-mode BN: scale into the 3x3 weights, shift into a per-channel f32 bias.
    scale = gamma / jnp.sqrt(var + eps)
    bias2d = (beta - mean * scale).astype(jnp.float32).reshape(Ch, 1)
    # (Ch, Cin, 3, 3) -> (Ch, 3, 3, Cin) -> (Ch, 9*Cin): tap-major, channel-minor,
    # matching the in-kernel patch row order t*Cin + c.
    w1_mat = jnp.transpose(w1_oihw, (0, 2, 3, 1)).reshape(Ch, K)
    w1_fold = (w1_mat * scale[:, None]).astype(cdt)
    # 1x1 predictor weights, zero-padded Ncls -> NclsP for unmasked stores.
    w2_pad = jnp.pad(w2_oihw[:, :, 0, 0], ((0, NclsP - Ncls), (0, 0))).astype(cdt)

    # Compile-time-constant 'same'-padding boundary masks for the 9 taps (tiny: 9 KiB).
    hh = np.arange(HW) // W
    ww = np.arange(HW) % W
    masks_np = np.ones((9, 1, HW), np.float32)
    t = 0
    for dh in (-1, 0, 1):
        for dw in (-1, 0, 1):
            ok = np.ones(HW, bool)
            if dh == -1:
                ok &= hh >= 1
            elif dh == 1:
                ok &= hh <= H - 2
            if dw == -1:
                ok &= ww >= 1
            elif dw == 1:
                ok &= ww <= W - 2
            masks_np[t, 0] = ok.astype(np.float32)
            t += 1
    masks = jnp.asarray(masks_np)

    in_bytes = 2 if use_bf16 else 4
    flops = 2 * N * HW * (K * Ch + Ch * NclsP)
    bytes_accessed = (N * Cin * HW * in_bytes + Ch * K * in_bytes + Ch * 4
                      + NclsP * Ch * in_bytes + 9 * HW * 4 + N * NclsP * HW * 4)

    kernel = functools.partial(mgnet_head_kernel, W=W)

    out = pl.pallas_call(
        kernel,
        out_shape=jax.ShapeDtypeStruct((N, NclsP, HW), jnp.float32),
        grid_spec=pltpu.PrefetchScalarGridSpec(
            num_scalar_prefetch=0,
            grid=(G,),
            in_specs=[
                pl.BlockSpec((NB, Cin, HW), lambda g: (g, 0, 0)),
                # Weights/bias/masks use constant index maps (resident across steps).
                # TODO(synk): at production Ch/K sizes, mark these
                # pipeline_mode=pl.Buffered(1), add an HW (lane) grid axis with
                # HW_tile <= ~1024 on v7x (64 MiB VMEM) / 2048 on v5e-v6e, and set
                # vmem_limit_bytes explicitly.
                pl.BlockSpec((Ch, K), lambda g: (0, 0)),
                pl.BlockSpec((Ch, 1), lambda g: (0, 0)),
                pl.BlockSpec((NclsP, Ch), lambda g: (0, 0)),
                pl.BlockSpec((9, 1, HW), lambda g: (0, 0, 0)),
            ],
            out_specs=pl.BlockSpec((NB, NclsP, HW), lambda g: (g, 0, 0)),
            scratch_shapes=[pltpu.VMEM((K, NB * HW), cdt)],
        ),
        compiler_params=pltpu.CompilerParams(dimension_semantics=("parallel",)),
        cost_estimate=pl.CostEstimate(flops=flops, transcendentals=0,
                                      bytes_accessed=bytes_accessed),
    )(x_in, w1_fold, bias2d, w2_pad, masks)

    # (N, NclsP, HW) is already NCHW-contiguous: free reshape + tiny class slice.
    return out.reshape(N, NclsP, H, W)[:, :Ncls]


def ref_forward(x, w1_oihw, gamma, beta, mean, var, w2_oihw, eps=1e-5):
    """Pure-JAX reference mirroring the PyTorch module (NCHW, eval-mode BN)."""
    y = jax.lax.conv_general_dilated(
        x, w1_oihw, window_strides=(1, 1), padding=((1, 1), (1, 1)),
        dimension_numbers=('NCHW', 'OIHW', 'NCHW'))
    s = gamma / jnp.sqrt(var + eps)
    y = y * s[None, :, None, None] + (beta - mean * s)[None, :, None, None]
    y = jnp.where(y > 0, y, 0.01 * y)
    y = jax.lax.conv_general_dilated(
        y, w2_oihw, window_strides=(1, 1), padding=((0, 0), (0, 0)),
        dimension_numbers=('NCHW', 'OIHW', 'NCHW'))
    return y


if __name__ == "__main__":
    # Shapes consistent with MGNetHead(in_channels=4, head_channels=32, num_classes=5).
    N, Cin, H, W = 2, 4, 16, 16
    Ch, Ncls = 32, 5

    key = jax.random.PRNGKey(0)
    k_x, k_w1, k_w2, k_g, k_b, k_m, k_v = jax.random.split(key, 7)

    x = jax.random.normal(k_x, (N, Cin, H, W), dtype=jnp.float32)

    # head conv: kaiming_normal_(a=1) -> std = 1/sqrt(fan_in), fan_in = Cin*3*3
    w1 = jax.random.normal(k_w1, (Ch, Cin, 3, 3), dtype=jnp.float32) / np.sqrt(Cin * 9)
    # predictor conv 1x1 (deterministic synthetic init)
    w2 = jax.random.normal(k_w2, (Ncls, Ch, 1, 1), dtype=jnp.float32) / np.sqrt(Ch)

    # InPlaceABNSync (eval-mode) parameters, folded into w1 / bias by the wrapper.
    gamma = 1.0 + 0.1 * jax.random.normal(k_g, (Ch,), dtype=jnp.float32)
    beta = 0.05 * jax.random.normal(k_b, (Ch,), dtype=jnp.float32)
    mean = 0.1 * jax.random.normal(k_m, (Ch,), dtype=jnp.float32)
    var = jax.random.uniform(k_v, (Ch,), minval=0.5, maxval=1.5, dtype=jnp.float32)

    expected = jax.block_until_ready(ref_forward(x, w1, gamma, beta, mean, var, w2))

    # Exactness check: f32 path, tight tolerance.
    out_f32 = jax.block_until_ready(
        mgnet_head_forward(x, w1, gamma, beta, mean, var, w2, use_bf16=False))
    assert out_f32.shape == (N, Ncls, H, W), out_f32.shape
    np.testing.assert_allclose(np.asarray(out_f32), np.asarray(expected),
                               atol=1e-4, rtol=1e-4)

    # Default perf path: bf16 inputs/weights, f32 accumulation -> loosened tolerance.
    out_bf16 = jax.block_until_ready(
        mgnet_head_forward(x, w1, gamma, beta, mean, var, w2, use_bf16=True))
    assert out_bf16.shape == (N, Ncls, H, W), out_bf16.shape
    np.testing.assert_allclose(np.asarray(out_bf16), np.asarray(expected),
                               atol=5e-2, rtol=5e-2)

    # TODO(synk): training-mode (cross-replica synced batch-stat) InPlaceABNSync is not
    # reproduced; eval-mode BN is folded into the conv weights / per-channel bias.
    print("KERNEL_OK")
</pallas_src>

<mosaic_0001>
module attributes {stable_mosaic.version = 11 : i64} {
  func.func @mgnet_head_kernel(%arg0: i32, %arg1: memref<2x4x256xf32, #tpu.memory_space<vmem>>, %arg2: memref<32x36xf32, #tpu.memory_space<vmem>>, %arg3: memref<32x1xf32, #tpu.memory_space<vmem>>, %arg4: memref<8x32xf32, #tpu.memory_space<vmem>>, %arg5: memref<9x1x256xf32, #tpu.memory_space<vmem>>, %arg6: memref<2x8x256xf32, #tpu.memory_space<vmem>>, %arg7: memref<36x512xf32, #tpu.memory_space<vmem>>) attributes {dimension_semantics = [#tpu.dimension_semantics<parallel>], iteration_bounds = array<i64: 1>, scalar_prefetch = 0 : i64, scratch_operands = 1 : i64, tpu.core_type = #tpu.core_type<tc>, window_params = [{transform_indices = @transform_0, window_bounds = array<i64: 2, 4, 256>}, {pipeline_mode = #tpu.pipeline_mode<synchronous>, transform_indices = @transform_1, window_bounds = array<i64: 32, 36>}, {pipeline_mode = #tpu.pipeline_mode<synchronous>, transform_indices = @transform_2, window_bounds = array<i64: 32, 1>}, {pipeline_mode = #tpu.pipeline_mode<synchronous>, transform_indices = @transform_3, window_bounds = array<i64: 8, 32>}, {pipeline_mode = #tpu.pipeline_mode<synchronous>, transform_indices = @transform_4, window_bounds = array<i64: 9, 1, 256>}, {transform_indices = @transform_5, window_bounds = array<i64: 2, 8, 256>}]} {
    %c0 = arith.constant 0 : index
    %c0_0 = arith.constant 0 : index
    %c0_1 = arith.constant 0 : index
    %0 = vector.load %arg5[%c0, %c0_0, %c0_1] : memref<9x1x256xf32, #tpu.memory_space<vmem>>, vector<9x1x256xf32>
    %c0_2 = arith.constant 0 : index
    %c0_3 = arith.constant 0 : index
    %c0_4 = arith.constant 0 : index
    %1 = vector.load %arg1[%c0_2, %c0_3, %c0_4] : memref<2x4x256xf32, #tpu.memory_space<vmem>>, vector<1x4x256xf32>
    %2 = vector.shape_cast %1 : vector<1x4x256xf32> to vector<4x256xf32>
    %c17_i32 = arith.constant 17 : i32
    %3 = tpu.dynamic_rotate %2 by %c17_i32 dim 1 : vector<4x256xf32>, i32 -> vector<4x256xf32>
    %4 = vector.extract_strided_slice %0 {offsets = [0, 0, 0], sizes = [1, 1, 256], strides = [1, 1, 1]} : vector<9x1x256xf32> to vector<1x1x256xf32>
    %5 = vector.shape_cast %4 : vector<1x1x256xf32> to vector<1x256xf32>
    %6 = vector.broadcast %5 : vector<1x256xf32> to vector<4x256xf32>
    %7 = arith.mulf %3, %6 : vector<4x256xf32>
    %c0_5 = arith.constant 0 : index
    %c0_6 = arith.constant 0 : index
    %8 = vector.load %arg7[%c0_5, %c0_6] : memref<36x512xf32, #tpu.memory_space<vmem>>, vector<4x256xf32>
    tpu.vector_store %arg7[%c0_5, %c0_6], %7 {strides = array<i32>} : memref<36x512xf32, #tpu.memory_space<vmem>>, vector<4x256xf32>,
    %c16_i32 = arith.constant 16 : i32
    %9 = tpu.dynamic_rotate %2 by %c16_i32 dim 1 : vector<4x256xf32>, i32 -> vector<4x256xf32>
    %10 = vector.extract_strided_slice %0 {offsets = [1, 0, 0], sizes = [1, 1, 256], strides = [1, 1, 1]} : vector<9x1x256xf32> to vector<1x1x256xf32>
    %11 = vector.shape_cast %10 : vector<1x1x256xf32> to vector<1x256xf32>
    %12 = vector.broadcast %11 : vector<1x256xf32> to vector<4x256xf32>
    %13 = arith.mulf %9, %12 : vector<4x256xf32>
    %c4 = arith.constant 4 : index
    %c0_7 = arith.constant 0 : index
    %14 = vector.load %arg7[%c4, %c0_7] : memref<36x512xf32, #tpu.memory_space<vmem>>, vector<4x256xf32>
    tpu.vector_store %arg7[%c4, %c0_7], %13 {strides = array<i32>} : memref<36x512xf32, #tpu.memory_space<vmem>>, vector<4x256xf32>,
    %c15_i32 = arith.constant 15 : i32
    %15 = tpu.dynamic_rotate %2 by %c15_i32 dim 1 : vector<4x256xf32>, i32 -> vector<4x256xf32>
    %16 = vector.extract_strided_slice %0 {offsets = [2, 0, 0], sizes = [1, 1, 256], strides = [1, 1, 1]} : vector<9x1x256xf32> to vector<1x1x256xf32>
    %17 = vector.shape_cast %16 : vector<1x1x256xf32> to vector<1x256xf32>
    %18 = vector.broadcast %17 : vector<1x256xf32> to vector<4x256xf32>
    %19 = arith.mulf %15, %18 : vector<4x256xf32>
    %c8 = arith.constant 8 : index
    %c0_8 = arith.constant 0 : index
    %20 = vector.load %arg7[%c8, %c0_8] : memref<36x512xf32, #tpu.memory_space<vmem>>, vector<4x256xf32>
    tpu.vector_store %arg7[%c8, %c0_8], %19 {strides = array<i32>} : memref<36x512xf32, #tpu.memory_space<vmem>>, vector<4x256xf32>,
    %c1_i32 = arith.constant 1 : i32
    %21 = tpu.dynamic_rotate %2 by %c1_i32 dim 1 : vector<4x256xf32>, i32 -> vector<4x256xf32>
    %22 = vector.extract_strided_slice %0 {offsets = [3, 0, 0], sizes = [1, 1, 256], strides = [1, 1, 1]} : vector<9x1x256xf32> to vector<1x1x256xf32>
    %23 = vector.shape_cast %22 : vector<1x1x256xf32> to vector<1x256xf32>
    %24 = vector.broadcast %23 : vector<1x256xf32> to vector<4x256xf32>
    %25 = arith.mulf %21, %24 : vector<4x256xf32>
    %c12 = arith.constant 12 : index
    %c0_9 = arith.constant 0 : index
    %26 = vector.load %arg7[%c12, %c0_9] : memref<36x512xf32, #tpu.memory_space<vmem>>, vector<4x256xf32>
    tpu.vector_store %arg7[%c12, %c0_9], %25 {strides = array<i32>} : memref<36x512xf32, #tpu.memory_space<vmem>>, vector<4x256xf32>,
    %c16 = arith.constant 16 : index
    %c0_10 = arith.constant 0 : index
    %27 = vector.load %arg7[%c16, %c0_10] : memref<36x512xf32, #tpu.memory_space<vmem>>, vector<4x256xf32>
    tpu.vector_store %arg7[%c16, %c0_10], %2 {strides = array<i32>} : memref<36x512xf32, #tpu.memory_space<vmem>>, vector<4x256xf32>,
    %c255_i32 = arith.constant 255 : i32
    %28 = tpu.dynamic_rotate %2 by %c255_i32 dim 1 : vector<4x256xf32>, i32 -> vector<4x256xf32>
    %29 = vector.extract_strided_slice %0 {offsets = [5, 0, 0], sizes = [1, 1, 256], strides = [1, 1, 1]} : vector<9x1x256xf32> to vector<1x1x256xf32>
    %30 = vector.shape_cast %29 : vector<1x1x256xf32> to vector<1x256xf32>
    %31 = vector.broadcast %30 : vector<1x256xf32> to vector<4x256xf32>
    %32 = arith.mulf %28, %31 : vector<4x256xf32>
    %c20 = arith.constant 20 : index
    %c0_11 = arith.constant 0 : index
    %33 = vector.load %arg7[%c20, %c0_11] : memref<36x512xf32, #tpu.memory_space<vmem>>, vector<4x256xf32>
    tpu.vector_store %arg7[%c20, %c0_11], %32 {strides = array<i32>} : memref<36x512xf32, #tpu.memory_space<vmem>>, vector<4x256xf32>,
    %c241_i32 = arith.constant 241 : i32
    %34 = tpu.dynamic_rotate %2 by %c241_i32 dim 1 : vector<4x256xf32>, i32 -> vector<4x256xf32>
    %35 = vector.extract_strided_slice %0 {offsets = [6, 0, 0], sizes = [1, 1, 256], strides = [1, 1, 1]} : vector<9x1x256xf32> to vector<1x1x256xf32>
    %36 = vector.shape_cast %35 : vector<1x1x256xf32> to vector<1x256xf32>
    %37 = vector.broadcast %36 : vector<1x256xf32> to vector<4x256xf32>
    %38 = arith.mulf %34, %37 : vector<4x256xf32>
    %c24 = arith.constant 24 : index
    %c0_12 = arith.constant 0 : index
    %39 = vector.load %arg7[%c24, %c0_12] : memref<36x512xf32, #tpu.memory_space<vmem>>, vector<4x256xf32>
    tpu.vector_store %arg7[%c24, %c0_12], %38 {strides = array<i32>} : memref<36x512xf32, #tpu.memory_space<vmem>>, vector<4x256xf32>,
    %c240_i32 = arith.constant 240 : i32
    %40 = tpu.dynamic_rotate %2 by %c240_i32 dim 1 : vector<4x256xf32>, i32 -> vector<4x256xf32>
    %41 = vector.extract_strided_slice %0 {offsets = [7, 0, 0], sizes = [1, 1, 256], strides = [1, 1, 1]} : vector<9x1x256xf32> to vector<1x1x256xf32>
    %42 = vector.shape_cast %41 : vector<1x1x256xf32> to vector<1x256xf32>
    %43 = vector.broadcast %42 : vector<1x256xf32> to vector<4x256xf32>
    %44 = arith.mulf %40, %43 : vector<4x256xf32>
    %c28 = arith.constant 28 : index
    %c0_13 = arith.constant 0 : index
    %45 = vector.load %arg7[%c28, %c0_13] : memref<36x512xf32, #tpu.memory_space<vmem>>, vector<4x256xf32>
    tpu.vector_store %arg7[%c28, %c0_13], %44 {strides = array<i32>} : memref<36x512xf32, #tpu.memory_space<vmem>>, vector<4x256xf32>,
    %c239_i32 = arith.constant 239 : i32
    %46 = tpu.dynamic_rotate %2 by %c239_i32 dim 1 : vector<4x256xf32>, i32 -> vector<4x256xf32>
    %47 = vector.extract_strided_slice %0 {offsets = [8, 0, 0], sizes = [1, 1, 256], strides = [1, 1, 1]} : vector<9x1x256xf32> to vector<1x1x256xf32>
    %48 = vector.shape_cast %47 : vector<1x1x256xf32> to vector<1x256xf32>
    %49 = vector.broadcast %48 : vector<1x256xf32> to vector<4x256xf32>
    %50 = arith.mulf %46, %49 : vector<4x256xf32>
    %c32 = arith.constant 32 : index
    %c0_14 = arith.constant 0 : index
    %51 = vector.load %arg7[%c32, %c0_14] : memref<36x512xf32, #tpu.memory_space<vmem>>, vector<4x256xf32>
    tpu.vector_store %arg7[%c32, %c0_14], %50 {strides = array<i32>} : memref<36x512xf32, #tpu.memory_space<vmem>>, vector<4x256xf32>,
    %c1 = arith.constant 1 : index
    %c0_15 = arith.constant 0 : index
    %c0_16 = arith.constant 0 : index
    %52 = vector.load %arg1[%c1, %c0_15, %c0_16] : memref<2x4x256xf32, #tpu.memory_space<vmem>>, vector<1x4x256xf32>
    %53 = vector.shape_cast %52 : vector<1x4x256xf32> to vector<4x256xf32>
    %c17_i32_17 = arith.constant 17 : i32
    %54 = tpu.dynamic_rotate %53 by %c17_i32_17 dim 1 : vector<4x256xf32>, i32 -> vector<4x256xf32>
    %55 = vector.extract_strided_slice %0 {offsets = [0, 0, 0], sizes = [1, 1, 256], strides = [1, 1, 1]} : vector<9x1x256xf32> to vector<1x1x256xf32>
    %56 = vector.shape_cast %55 : vector<1x1x256xf32> to vector<1x256xf32>
    %57 = vector.broadcast %56 : vector<1x256xf32> to vector<4x256xf32>
    %58 = arith.mulf %54, %57 : vector<4x256xf32>
    %c0_18 = arith.constant 0 : index
    %c256 = arith.constant 256 : index
    %59 = vector.load %arg7[%c0_18, %c256] : memref<36x512xf32, #tpu.memory_space<vmem>>, vector<4x256xf32>
    tpu.vector_store %arg7[%c0_18, %c256], %58 {strides = array<i32>} : memref<36x512xf32, #tpu.memory_space<vmem>>, vector<4x256xf32>,
    %c16_i32_19 = arith.constant 16 : i32
    %60 = tpu.dynamic_rotate %53 by %c16_i32_19 dim 1 : vector<4x256xf32>, i32 -> vector<4x256xf32>
    %61 = vector.extract_strided_slice %0 {offsets = [1, 0, 0], sizes = [1, 1, 256], strides = [1, 1, 1]} : vector<9x1x256xf32> to vector<1x1x256xf32>
    %62 = vector.shape_cast %61 : vector<1x1x256xf32> to vector<1x256xf32>
    %63 = vector.broadcast %62 : vector<1x256xf32> to vector<4x256xf32>
    %64 = arith.mulf %60, %63 : vector<4x256xf32>
    %c4_20 = arith.constant 4 : index
    %c256_21 = arith.constant 256 : index
    %65 = vector.load %arg7[%c4_20, %c256_21] : memref<36x512xf32, #tpu.memory_space<vmem>>, vector<4x256xf32>
    tpu.vector_store %arg7[%c4_20, %c256_21], %64 {strides = array<i32>} : memref<36x512xf32, #tpu.memory_space<vmem>>, vector<4x256xf32>,
    %c15_i32_22 = arith.constant 15 : i32
    %66 = tpu.dynamic_rotate %53 by %c15_i32_22 dim 1 : vector<4x256xf32>, i32 -> vector<4x256xf32>
    %67 = vector.extract_strided_slice %0 {offsets = [2, 0, 0], sizes = [1, 1, 256], strides = [1, 1, 1]} : vector<9x1x256xf32> to vector<1x1x256xf32>
    %68 = vector.shape_cast %67 : vector<1x1x256xf32> to vector<1x256xf32>
    %69 = vector.broadcast %68 : vector<1x256xf32> to vector<4x256xf32>
    %70 = arith.mulf %66, %69 : vector<4x256xf32>
    %c8_23 = arith.constant 8 : index
    %c256_24 = arith.constant 256 : index
    %71 = vector.load %arg7[%c8_23, %c256_24] : memref<36x512xf32, #tpu.memory_space<vmem>>, vector<4x256xf32>
    tpu.vector_store %arg7[%c8_23, %c256_24], %70 {strides = array<i32>} : memref<36x512xf32, #tpu.memory_space<vmem>>, vector<4x256xf32>,
    %c1_i32_25 = arith.constant 1 : i32
    %72 = tpu.dynamic_rotate %53 by %c1_i32_25 dim 1 : vector<4x256xf32>, i32 -> vector<4x256xf32>
    %73 = vector.extract_strided_slice %0 {offsets = [3, 0, 0], sizes = [1, 1, 256], strides = [1, 1, 1]} : vector<9x1x256xf32> to vector<1x1x256xf32>
    %74 = vector.shape_cast %73 : vector<1x1x256xf32> to vector<1x256xf32>
    %75 = vector.broadcast %74 : vector<1x256xf32> to vector<4x256xf32>
    %76 = arith.mulf %72, %75 : vector<4x256xf32>
    %c12_26 = arith.constant 12 : index
    %c256_27 = arith.constant 256 : index
    %77 = vector.load %arg7[%c12_26, %c256_27] : memref<36x512xf32, #tpu.memory_space<vmem>>, vector<4x256xf32>
    tpu.vector_store %arg7[%c12_26, %c256_27], %76 {strides = array<i32>} : memref<36x512xf32, #tpu.memory_space<vmem>>, vector<4x256xf32>,
    %c16_28 = arith.constant 16 : index
    %c256_29 = arith.constant 256 : index
    %78 = vector.load %arg7[%c16_28, %c256_29] : memref<36x512xf32, #tpu.memory_space<vmem>>, vector<4x256xf32>
    tpu.vector_store %arg7[%c16_28, %c256_29], %53 {strides = array<i32>} : memref<36x512xf32, #tpu.memory_space<vmem>>, vector<4x256xf32>,
    %c255_i32_30 = arith.constant 255 : i32
    %79 = tpu.dynamic_rotate %53 by %c255_i32_30 dim 1 : vector<4x256xf32>, i32 -> vector<4x256xf32>
    %80 = vector.extract_strided_slice %0 {offsets = [5, 0, 0], sizes = [1, 1, 256], strides = [1, 1, 1]} : vector<9x1x256xf32> to vector<1x1x256xf32>
    %81 = vector.shape_cast %80 : vector<1x1x256xf32> to vector<1x256xf32>
    %82 = vector.broadcast %81 : vector<1x256xf32> to vector<4x256xf32>
    %83 = arith.mulf %79, %82 : vector<4x256xf32>
    %c20_31 = arith.constant 20 : index
    %c256_32 = arith.constant 256 : index
    %84 = vector.load %arg7[%c20_31, %c256_32] : memref<36x512xf32, #tpu.memory_space<vmem>>, vector<4x256xf32>
    tpu.vector_store %arg7[%c20_31, %c256_32], %83 {strides = array<i32>} : memref<36x512xf32, #tpu.memory_space<vmem>>, vector<4x256xf32>,
    %c241_i32_33 = arith.constant 241 : i32
    %85 = tpu.dynamic_rotate %53 by %c241_i32_33 dim 1 : vector<4x256xf32>, i32 -> vector<4x256xf32>
    %86 = vector.extract_strided_slice %0 {offsets = [6, 0, 0], sizes = [1, 1, 256], strides = [1, 1, 1]} : vector<9x1x256xf32> to vector<1x1x256xf32>
    %87 = vector.shape_cast %86 : vector<1x1x256xf32> to vector<1x256xf32>
    %88 = vector.broadcast %87 : vector<1x256xf32> to vector<4x256xf32>
    %89 = arith.mulf %85, %88 : vector<4x256xf32>
    %c24_34 = arith.constant 24 : index
    %c256_35 = arith.constant 256 : index
    %90 = vector.load %arg7[%c24_34, %c256_35] : memref<36x512xf32, #tpu.memory_space<vmem>>, vector<4x256xf32>
    tpu.vector_store %arg7[%c24_34, %c256_35], %89 {strides = array<i32>} : memref<36x512xf32, #tpu.memory_space<vmem>>, vector<4x256xf32>,
    %c240_i32_36 = arith.constant 240 : i32
    %91 = tpu.dynamic_rotate %53 by %c240_i32_36 dim 1 : vector<4x256xf32>, i32 -> vector<4x256xf32>
    %92 = vector.extract_strided_slice %0 {offsets = [7, 0, 0], sizes = [1, 1, 256], strides = [1, 1, 1]} : vector<9x1x256xf32> to vector<1x1x256xf32>
    %93 = vector.shape_cast %92 : vector<1x1x256xf32> to vector<1x256xf32>
    %94 = vector.broadcast %93 : vector<1x256xf32> to vector<4x256xf32>
    %95 = arith.mulf %91, %94 : vector<4x256xf32>
    %c28_37 = arith.constant 28 : index
    %c256_38 = arith.constant 256 : index
    %96 = vector.load %arg7[%c28_37, %c256_38] : memref<36x512xf32, #tpu.memory_space<vmem>>, vector<4x256xf32>
    tpu.vector_store %arg7[%c28_37, %c256_38], %95 {strides = array<i32>} : memref<36x512xf32, #tpu.memory_space<vmem>>, vector<4x256xf32>,
    %c239_i32_39 = arith.constant 239 : i32
    %97 = tpu.dynamic_rotate %53 by %c239_i32_39 dim 1 : vector<4x256xf32>, i32 -> vector<4x256xf32>
    %98 = vector.extract_strided_slice %0 {offsets = [8, 0, 0], sizes = [1, 1, 256], strides = [1, 1, 1]} : vector<9x1x256xf32> to vector<1x1x256xf32>
    %99 = vector.shape_cast %98 : vector<1x1x256xf32> to vector<1x256xf32>
    %100 = vector.broadcast %99 : vector<1x256xf32> to vector<4x256xf32>
    %101 = arith.mulf %97, %100 : vector<4x256xf32>
    %c32_40 = arith.constant 32 : index
    %c256_41 = arith.constant 256 : index
    %102 = vector.load %arg7[%c32_40, %c256_41] : memref<36x512xf32, #tpu.memory_space<vmem>>, vector<4x256xf32>
    tpu.vector_store %arg7[%c32_40, %c256_41], %101 {strides = array<i32>} : memref<36x512xf32, #tpu.memory_space<vmem>>, vector<4x256xf32>,
    %c0_42 = arith.constant 0 : index
    %c0_43 = arith.constant 0 : index
    %103 = vector.load %arg2[%c0_42, %c0_43] : memref<32x36xf32, #tpu.memory_space<vmem>>, vector<32x36xf32>
    %c0_44 = arith.constant 0 : index
    %c0_45 = arith.constant 0 : index
    %104 = vector.load %arg7[%c0_44, %c0_45] : memref<36x512xf32, #tpu.memory_space<vmem>>, vector<36x512xf32>
    %cst = arith.constant dense<0.000000e+00> : vector<32x512xf32>
    %105 = tpu.matmul %103, %104, %cst {dimension_numbers = #tpu.dot_dimension_numbers<[1], [0], [0], [1], [0, 0, 1, 1], [], []>} : vector<32x36xf32>, vector<36x512xf32>, vector<32x512xf32> -> vector<32x512xf32>
    %c0_46 = arith.constant 0 : index
    %c0_47 = arith.constant 0 : index
    %106 = vector.load %arg3[%c0_46, %c0_47] : memref<32x1xf32, #tpu.memory_space<vmem>>, vector<32x1xf32>
    %107 = vector.broadcast %106 : vector<32x1xf32> to vector<32x512xf32>
    %108 = arith.addf %105, %107 : vector<32x512xf32>
    %cst_48 = arith.constant 0.000000e+00 : f32
    %109 = vector.broadcast %cst_48 : f32 to vector<32x512xf32>
    %110 = arith.cmpf ogt, %108, %109 : vector<32x512xf32>
    %cst_49 = arith.constant 0.00999999977 : f32
    %111 = vector.broadcast %cst_49 : f32 to vector<32x512xf32>
    %112 = arith.mulf %111, %108 : vector<32x512xf32>
    %113 = arith.select %110, %108, %112 : vector<32x512xi1>, vector<32x512xf32>
    %c0_50 = arith.constant 0 : index
    %c0_51 = arith.constant 0 : index
    %114 = vector.load %arg4[%c0_50, %c0_51] : memref<8x32xf32, #tpu.memory_space<vmem>>, vector<8x32xf32>
    %cst_52 = arith.constant dense<0.000000e+00> : vector<8x512xf32>
    %115 = tpu.matmul %114, %113, %cst_52 {dimension_numbers = #tpu.dot_dimension_numbers<[1], [0], [0], [1], [0, 0, 1, 1], [], []>} : vector<8x32xf32>, vector<32x512xf32>, vector<8x512xf32> -> vector<8x512xf32>
    %116 = vector.extract_strided_slice %115 {offsets = [0, 0], sizes = [8, 256], strides = [1, 1]} : vector<8x512xf32> to vector<8x256xf32>
    %c0_53 = arith.constant 0 : index
    %c0_54 = arith.constant 0 : index
    %c0_55 = arith.constant 0 : index
    %117 = vector.load %arg6[%c0_53, %c0_54, %c0_55] : memref<2x8x256xf32, #tpu.memory_space<vmem>>, vector<1x8x256xf32>
    %118 = vector.shape_cast %117 : vector<1x8x256xf32> to vector<8x256xf32>
    %119 = vector.shape_cast %116 : vector<8x256xf32> to vector<1x8x256xf32>
    tpu.vector_store %arg6[%c0_53, %c0_54, %c0_55], %119 {strides = array<i32>} : memref<2x8x256xf32, #tpu.memory_space<vmem>>, vector<1x8x256xf32>,
    %120 = vector.extract_strided_slice %115 {offsets = [0, 256], sizes = [8, 256], strides = [1, 1]} : vector<8x512xf32> to vector<8x256xf32>
    %c1_56 = arith.constant 1 : index
    %c0_57 = arith.constant 0 : index
    %c0_58 = arith.constant 0 : index
    %121 = vector.load %arg6[%c1_56, %c0_57, %c0_58] : memref<2x8x256xf32, #tpu.memory_space<vmem>>, vector<1x8x256xf32>
    %122 = vector.shape_cast %121 : vector<1x8x256xf32> to vector<8x256xf32>
    %123 = vector.shape_cast %120 : vector<8x256xf32> to vector<1x8x256xf32>
    tpu.vector_store %arg6[%c1_56, %c0_57, %c0_58], %123 {strides = array<i32>} : memref<2x8x256xf32, #tpu.memory_space<vmem>>, vector<1x8x256xf32>,
    return
  }
  func.func @transform_0(%arg0: i32) -> (i32, i32, i32) {
    %c0_i32 = arith.constant 0 : i32
    %c0_i32_0 = arith.constant 0 : i32
    %c0_i32_1 = arith.constant 0 : i32
    return %arg0, %c0_i32, %c0_i32_0 : i32, i32, i32
  }
  func.func @transform_1(%arg0: i32) -> (i32, i32) {
    %c0_i32 = arith.constant 0 : i32
    %c0_i32_0 = arith.constant 0 : i32
    %c0_i32_1 = arith.constant 0 : i32
    return %c0_i32, %c0_i32_0 : i32, i32
  }
  func.func @transform_2(%arg0: i32) -> (i32, i32) {
    %c0_i32 = arith.constant 0 : i32
    %c0_i32_0 = arith.constant 0 : i32
    %c0_i32_1 = arith.constant 0 : i32
    return %c0_i32, %c0_i32_0 : i32, i32
  }
  func.func @transform_3(%arg0: i32) -> (i32, i32) {
    %c0_i32 = arith.constant 0 : i32
    %c0_i32_0 = arith.constant 0 : i32
    %c0_i32_1 = arith.constant 0 : i32
    return %c0_i32, %c0_i32_0 : i32, i32
  }
  func.func @transform_4(%arg0: i32) -> (i32, i32, i32) {
    %c0_i32 = arith.constant 0 : i32
    %c0_i32_0 = arith.constant 0 : i32
    %c0_i32_1 = arith.constant 0 : i32
    %c0_i32_2 = arith.constant 0 : i32
    return %c0_i32, %c0_i32_0, %c0_i32_1 : i32, i32, i32
  }
  func.func @transform_5(%arg0: i32) -> (i32, i32, i32) {
    %c0_i32 = arith.constant 0 : i32
    %c0_i32_0 = arith.constant 0 : i32
    %c0_i32_1 = arith.constant 0 : i32
    return %arg0, %c0_i32, %c0_i32_0 : i32, i32, i32
  }
}

</mosaic_0001>

<llo_original>
// kernel: tpu_custom_call.1
$region0: #{tpu_custom_call.1}
  #allocation0 [shape = 'u32[]', space=smem, size = 0x4, offset = 0x4, fixed_abs, tag = 'smem constant byte address 0x4 - core index']
  #allocation1 [shape = 'u32[144,128]{1,0:T(1,128)}', space=vmem, size = 0x12000, scoped, tag = 'internal scratch']
  #allocation2 [shape = 'f32[36,512]{1,0:T(8,128)}', space=vmem, size = 0x14000, scoped, tag = 'scratch operand']
  %s0 = inlined_call_operand.hbm [shape: f32[2,4,256], index: 0, kind: input, shape index: {}]
  %s1 = inlined_call_operand.vmem [shape: f32[32,36], index: 1, kind: input, shape index: {}]
  %s2 = inlined_call_operand.vmem [shape: f32[32,1], index: 2, kind: input, shape index: {}]
  %s3 = inlined_call_operand.hbm [shape: f32[8,32], index: 3, kind: input, shape index: {}]
  %s4 = inlined_call_operand.hbm [shape: f32[9,1,256], index: 4, kind: input, shape index: {}]
  %s5 = inlined_call_operand.hbm [shape: f32[2,8,256], index: 5, kind: output, shape index: {}]
  %s6 = sld [smem:[#allocation0]]
  $region42: #{tpu_custom_call.1} parent=0
    _
  %s8 = ssub.s32 1, %s6
  %s9 = scalar_select 0, %s8, %s6
  $region1: #{tpu_custom_call.1} parent=0
    #allocation3 [shape = 'u8[8192]{0}', space=vmem, size = 0x2000, scoped, tag = 'input window, operand 0, single buffered']
    #allocation4 [shape = 's32[1]{0}', space=sflag, size = 0x4, scoped, tag = 'scoped memory for tpu_custom_call.1']
    #allocation5 [shape = 's32[1]{0}', space=sflag, size = 0x4, scoped, tag = 'scoped memory for tpu_custom_call.1']
    #allocation6 [shape = 'u8[4096]{0}', space=vmem, size = 0x1000, scoped, tag = 'input window, operand 3, single buffered']
    #allocation7 [shape = 's32[1]{0}', space=sflag, size = 0x4, scoped, tag = 'scoped memory for tpu_custom_call.1']
    #allocation8 [shape = 'u8[9216]{0}', space=vmem, size = 0x2400, scoped, tag = 'input window, operand 4, single buffered']
    #allocation9 [shape = 'u8[16384]{0}', space=vmem, size = 0x4000, scoped, tag = 'output window, operand 0, single buffered']
    %10 = vsyncpa [#allocation4], 0
    %11 = vsyncpa [#allocation7], 0
    %12 = vsyncpa [#allocation5], 0
    // Predicated region
    $region2: #{tpu_custom_call.1} parent=1 // pred_check
      _
    $region3: #{tpu_custom_call.1} parent=1 // pred_check_branch
      %14 = sbr.rel (0) target = $region5
    $region4: #{tpu_custom_call.1} parent=1 // pred_region
      %s16 = ssub.s32 256, 256
      %17 = vsyncadd [#allocation4], %s16
      %s18 = sshll.u32 [#allocation3], 4
      %s19 = int_to_ptr.vmem [resolvable:$true] %s18
      %24 = dma.hbm_to_vmem [thread:$0]  %s0, 256, %s19, [#allocation4], 128, 128, 8
    $region5: #{tpu_custom_call.1} parent=1 // pred_fallthru
      _
    // Predicated region
    $region6: #{tpu_custom_call.1} parent=1 // pred_check
      _
    $region7: #{tpu_custom_call.1} parent=1 // pred_check_branch
      %26 = sbr.rel (0) target = $region9
    $region8: #{tpu_custom_call.1} parent=1 // pred_region
      _
    $region9: #{tpu_custom_call.1} parent=1 // pred_fallthru
      _
    // Predicated region
    $region10: #{tpu_custom_call.1} parent=1 // pred_check
      _
    $region11: #{tpu_custom_call.1} parent=1 // pred_check_branch
      %28 = sbr.rel (0) target = $region13
    $region12: #{tpu_custom_call.1} parent=1 // pred_region
      _
    $region13: #{tpu_custom_call.1} parent=1 // pred_fallthru
      _
    // Predicated region
    $region14: #{tpu_custom_call.1} parent=1 // pred_check
      _
    $region15: #{tpu_custom_call.1} parent=1 // pred_check_branch
      %30 = sbr.rel (0) target = $region17
    $region16: #{tpu_custom_call.1} parent=1 // pred_region
      %s32 = ssub.s32 128, 128
      %33 = vsyncadd [#allocation7], %s32
      %s35 = sshll.u32 [#allocation6], 4
      %s36 = int_to_ptr.vmem [resolvable:$true] %s35
      %38 = dma.hbm_to_vmem [thread:$0]  %s3, 128, %s36, [#allocation7]
    $region17: #{tpu_custom_call.1} parent=1 // pred_fallthru
      _
    // Predicated region
    $region18: #{tpu_custom_call.1} parent=1 // pred_check
      _
    $region19: #{tpu_custom_call.1} parent=1 // pred_check_branch
      %40 = sbr.rel (0) target = $region21
    $region20: #{tpu_custom_call.1} parent=1 // pred_region
      %s42 = ssub.s32 288, 288
      %43 = vsyncadd [#allocation7], %s42
      %s44 = sshll.u32 [#allocation8], 4
      %s45 = int_to_ptr.vmem [resolvable:$true] %s44
      %50 = dma.hbm_to_vmem [thread:$0]  %s4, 288, %s45, [#allocation7], 32, 32, 2
    $region21: #{tpu_custom_call.1} parent=1 // pred_fallthru
      _
    // Predicated region
    $region22: #{tpu_custom_call.1} parent=1 // pred_check
      _
    $region23: #{tpu_custom_call.1} parent=1 // pred_check_branch
      %52 = sbr.rel (0) target = $region25
    $region24: #{tpu_custom_call.1} parent=1 // pred_region
      %53 = dma.done [#allocation4], 256
    $region25: #{tpu_custom_call.1} parent=1 // pred_fallthru
      _
    // Predicated region
    $region26: #{tpu_custom_call.1} parent=1 // pred_check
      _
    $region27: #{tpu_custom_call.1} parent=1 // pred_check_branch
      %55 = sbr.rel (0) target = $region29
    $region28: #{tpu_custom_call.1} parent=1 // pred_region
      %56 = dma.done [#allocation7], 128
    $region29: #{tpu_custom_call.1} parent=1 // pred_fallthru
      _
    // Predicated region
    $region30: #{tpu_custom_call.1} parent=1 // pred_check
      _
    $region31: #{tpu_custom_call.1} parent=1 // pred_check_branch
      %58 = sbr.rel (0) target = $region33
    $region32: #{tpu_custom_call.1} parent=1 // pred_region
      %59 = dma.done [#allocation7], 288
    $region33: #{tpu_custom_call.1} parent=1 // pred_fallthru
      _
    %v60 = vld [vmem:[#allocation8] sm:$0x3]
    %v61 = vld [vmem:[#allocation8 + $0x2] sm:$0x3]
    %v62 = vld [vmem:[#allocation8 + $0x4] sm:$0x3]
    %v63 = vld [vmem:[#allocation8 + $0x6] sm:$0x3]
    %v64 = vld [vmem:[#allocation8 + $0xa] sm:$0x3]
    %v65 = vld [vmem:[#allocation8 + $0xc] sm:$0x3]
    %v66 = vld [vmem:[#allocation8 + $0xe] sm:$0x3]
    %v67 = vld [vmem:[#allocation8 + $0x10] sm:$0x3]
    %v68 = vld [vmem:[#allocation3] sm:$0xff]
    %v70 = vcombine.high %v68, %v68
    %72 = vrot.lane.b32.xlu0 %v68, 17
    %v73 = vpop.permute.xlu0 %72
    %74 = vrot.lane.b32.xlu0 %v70, 17
    %v75 = vpop.permute.xlu0 %74
    %v76 = vlaneseq
    %v77 = vand.u32 %v76, 127
    %vm78 = vcmp.lt.s32.totalorder %v77, 17
    %v79 = vsel %vm78, %v73, %v75
    %v80 = vsel %vm78, %v75, %v73
    %v82 = vlaneseq
    %v83 = vshrl.u32 %v82, 7
    %v84 = vsub.s32 0, %v83
    %v85 = vrot.slane %v60, %v84
    %v86 = vlaneseq
    %v87 = vshrl.u32 %v86, 7
    %v88 = vsub.s32 1, %v87
    %v89 = vrot.slane %v60, %v88
    %v92 = vmul.f32 %v80, %v85
    %v93 = vmul.f32 %v79, %v89
    %94 = vst [vmem:[#allocation2] sm:$0xf] %v92
    %95 = vst [vmem:[#allocation2 + $0x8] sm:$0xf] %v93
    %96 = vrot.lane.b32.xlu0 %v68, 16
    %v97 = vpop.permute.xlu0 %96
    %98 = vrot.lane.b32.xlu0 %v70, 16
    %v99 = vpop.permute.xlu0 %98
    %vm100 = vcmp.lt.s32.totalorder %v77, 16
    %v101 = vsel %vm100, %v97, %v99
    %v102 = vsel %vm100, %v99, %v97
    %v104 = vlaneseq
    %v105 = vshrl.u32 %v104, 7
    %v106 = vsub.s32 0, %v105
    %v107 = vrot.slane %v61, %v106
    %v108 = vlaneseq
    %v109 = vshrl.u32 %v108, 7
    %v110 = vsub.s32 1, %v109
    %v111 = vrot.slane %v61, %v110
    %v114 = vmul.f32 %v102, %v107
    %v115 = vmul.f32 %v101, %v111
    %v118 = vrot.slane %v114, 4
    %v119 = vrot.slane %v115, 4
    %122 = vst [vmem:[#allocation2] sm:$0xf0] %v118
    %123 = vst [vmem:[#allocation2 + $0x8] sm:$0xf0] %v119
    %124 = vrot.lane.b32.xlu0 %v68, 15
    %v125 = vpop.permute.xlu0 %124
    %126 = vrot.lane.b32.xlu0 %v70, 15
    %v127 = vpop.permute.xlu0 %126
    %vm128 = vcmp.lt.s32.totalorder %v77, 15
    %v129 = vsel %vm128, %v125, %v127
    %v130 = vsel %vm128, %v127, %v125
    %v132 = vlaneseq
    %v133 = vshrl.u32 %v132, 7
    %v134 = vsub.s32 0, %v133
    %v135 = vrot.slane %v62, %v134
    %v136 = vlaneseq
    %v137 = vshrl.u32 %v136, 7
    %v138 = vsub.s32 1, %v137
    %v139 = vrot.slane %v62, %v138
    %v142 = vmul.f32 %v130, %v135
    %v143 = vmul.f32 %v129, %v139
    %144 = vst [vmem:[#allocation2 + $0x20] sm:$0xf] %v142
    %145 = vst [vmem:[#allocation2 + $0x28] sm:$0xf] %v143
    %146 = vrot.lane.b32.xlu0 %v68, 1
    %v147 = vpop.permute.xlu0 %146
    %148 = vrot.lane.b32.xlu0 %v70, 1
    %v149 = vpop.permute.xlu0 %148
    %vm150 = vcmp.lt.s32.totalorder %v77, 1
    %v151 = vsel %vm150, %v147, %v149
    %v152 = vsel %vm150, %v149, %v147
    %v154 = vlaneseq
    %v155 = vshrl.u32 %v154, 7
    %v156 = vsub.s32 0, %v155
    %v157 = vrot.slane %v63, %v156
    %v158 = vlaneseq
    %v159 = vshrl.u32 %v158, 7
    %v160 = vsub.s32 1, %v159
    %v161 = vrot.slane %v63, %v160
    %v164 = vmul.f32 %v152, %v157
    %v165 = vmul.f32 %v151, %v161
    %v168 = vrot.slane %v164, 4
    %v169 = vrot.slane %v165, 4
    %172 = vst [vmem:[#allocation2 + $0x20] sm:$0xf0] %v168
    %173 = vst [vmem:[#allocation2 + $0x28] sm:$0xf0] %v169
    %174 = vst [vmem:[#allocation2 + $0x40] sm:$0xf] %v68
    %175 = vst [vmem:[#allocation2 + $0x48] sm:$0xf] %v70
    %176 = vrot.lane.b32.xlu0 %v68, 127
    %v177 = vpop.permute.xlu0 %176
    %178 = vrot.lane.b32.xlu0 %v70, 127
    %v179 = vpop.permute.xlu0 %178
    %vm180 = vcmp.lt.s32.totalorder %v77, 127
    %v181 = vsel %vm180, %v177, %v179
    %v182 = vsel %vm180, %v179, %v177
    %v184 = vlaneseq
    %v185 = vshrl.u32 %v184, 7
    %v186 = vsub.s32 0, %v185
    %v187 = vrot.slane %v64, %v186
    %v188 = vlaneseq
    %v189 = vshrl.u32 %v188, 7
    %v190 = vsub.s32 1, %v189
    %v191 = vrot.slane %v64, %v190
    %v194 = vmul.f32 %v181, %v187
    %v195 = vmul.f32 %v182, %v191
    %v198 = vrot.slane %v194, 4
    %v199 = vrot.slane %v195, 4
    %202 = vst [vmem:[#allocation2 + $0x40] sm:$0xf0] %v198
    %203 = vst [vmem:[#allocation2 + $0x48] sm:$0xf0] %v199
    %204 = vrot.lane.b32.xlu0 %v68, 113
    %v205 = vpop.permute.xlu0 %204
    %206 = vrot.lane.b32.xlu0 %v70, 113
    %v207 = vpop.permute.xlu0 %206
    %vm208 = vcmp.lt.s32.totalorder %v77, 113
    %v209 = vsel %vm208, %v205, %v207
    %v210 = vsel %vm208, %v207, %v205
    %v212 = vlaneseq
    %v213 = vshrl.u32 %v212, 7
    %v214 = vsub.s32 0, %v213
    %v215 = vrot.slane %v65, %v214
    %v216 = vlaneseq
    %v217 = vshrl.u32 %v216, 7
    %v218 = vsub.s32 1, %v217
    %v219 = vrot.slane %v65, %v218
    %v222 = vmul.f32 %v209, %v215
    %v223 = vmul.f32 %v210, %v219
    %224 = vst [vmem:[#allocation2 + $0x60] sm:$0xf] %v222
    %225 = vst [vmem:[#allocation2 + $0x68] sm:$0xf] %v223
    %226 = vrot.lane.b32.xlu0 %v68, 112
    %v227 = vpop.permute.xlu0 %226
    %228 = vrot.lane.b32.xlu0 %v70, 112
    %v229 = vpop.permute.xlu0 %228
    %vm230 = vcmp.lt.s32.totalorder %v77, 112
    %v231 = vsel %vm230, %v227, %v229
    %v232 = vsel %vm230, %v229, %v227
    %v234 = vlaneseq
    %v235 = vshrl.u32 %v234, 7
    %v236 = vsub.s32 0, %v235
    %v237 = vrot.slane %v66, %v236
    %v238 = vlaneseq
    %v239 = vshrl.u32 %v238, 7
    %v240 = vsub.s32 1, %v239
    %v241 = vrot.slane %v66, %v240
    %v244 = vmul.f32 %v231, %v237
    %v245 = vmul.f32 %v232, %v241
    %v248 = vrot.slane %v244, 4
    %v249 = vrot.slane %v245, 4
    %252 = vst [vmem:[#allocation2 + $0x60] sm:$0xf0] %v248
    %253 = vst [vmem:[#allocation2 + $0x68] sm:$0xf0] %v249
    %254 = vrot.lane.b32.xlu0 %v68, 111
    %v255 = vpop.permute.xlu0 %254
    %256 = vrot.lane.b32.xlu0 %v70, 111
    %v257 = vpop.permute.xlu0 %256
    %vm258 = vcmp.lt.s32.totalorder %v77, 111
    %v259 = vsel %vm258, %v255, %v257
    %v260 = vsel %vm258, %v257, %v255
    %v262 = vlaneseq
    %v263 = vshrl.u32 %v262, 7
    %v264 = vsub.s32 0, %v263
    %v265 = vrot.slane %v67, %v264
    %v266 = vlaneseq
    %v267 = vshrl.u32 %v266, 7
    %v268 = vsub.s32 1, %v267
    %v269 = vrot.slane %v67, %v268
    %v272 = vmul.f32 %v259, %v265
    %v273 = vmul.f32 %v260, %v269
    %274 = vst [vmem:[#allocation2 + $0x80] sm:$0xf] %v272
    %275 = vst [vmem:[#allocation2 + $0x88] sm:$0xf] %v273
    %s276 = scalar_lea.vmem [#allocation3], 8
    %v277 = vld [vmem:[%s276] sm:$0xff]
    %v279 = vcombine.high %v277, %v277
    %281 = vrot.lane.b32.xlu0 %v277, 17
    %v282 = vpop.permute.xlu0 %281
    %283 = vrot.lane.b32.xlu0 %v279, 17
    %v284 = vpop.permute.xlu0 %283
    %v285 = vsel %vm78, %v282, %v284
    %v286 = vsel %vm78, %v284, %v282
    %v287 = vmul.f32 %v286, %v85
    %v288 = vmul.f32 %v285, %v89
    %289 = vst [vmem:[#allocation2 + $0x10] sm:$0xf] %v287
    %290 = vst [vmem:[#allocation2 + $0x18] sm:$0xf] %v288
    %291 = vrot.lane.b32.xlu0 %v277, 16
    %v292 = vpop.permute.xlu0 %291
    %293 = vrot.lane.b32.xlu0 %v279, 16
    %v294 = vpop.permute.xlu0 %293
    %v295 = vsel %vm100, %v292, %v294
    %v296 = vsel %vm100, %v294, %v292
    %v297 = vmul.f32 %v296, %v107
    %v298 = vmul.f32 %v295, %v111
    %v301 = vrot.slane %v297, 4
    %v302 = vrot.slane %v298, 4
    %305 = vst [vmem:[#allocation2 + $0x10] sm:$0xf0] %v301
    %306 = vst [vmem:[#allocation2 + $0x18] sm:$0xf0] %v302
    %307 = vrot.lane.b32.xlu0 %v277, 15
    %v308 = vpop.permute.xlu0 %307
    %309 = vrot.lane.b32.xlu0 %v279, 15
    %v310 = vpop.permute.xlu0 %309
    %v311 = vsel %vm128, %v308, %v310
    %v312 = vsel %vm128, %v310, %v308
    %v313 = vmul.f32 %v312, %v135
    %v314 = vmul.f32 %v311, %v139
    %315 = vst [vmem:[#allocation2 + $0x30] sm:$0xf] %v313
    %316 = vst [vmem:[#allocation2 + $0x38] sm:$0xf] %v314
    %317 = vrot.lane.b32.xlu0 %v277, 1
    %v318 = vpop.permute.xlu0 %317
    %319 = vrot.lane.b32.xlu0 %v279, 1
    %v320 = vpop.permute.xlu0 %319
    %v321 = vsel %vm150, %v318, %v320
    %v322 = vsel %vm150, %v320, %v318
    %v323 = vmul.f32 %v322, %v157
    %v324 = vmul.f32 %v321, %v161
    %v327 = vrot.slane %v323, 4
    %v328 = vrot.slane %v324, 4
    %331 = vst [vmem:[#allocation2 + $0x30] sm:$0xf0] %v327
    %332 = vst [vmem:[#allocation2 + $0x38] sm:$0xf0] %v328
    %333 = vst [vmem:[#allocation2 + $0x50] sm:$0xf] %v277
    %334 = vst [vmem:[#allocation2 + $0x58] sm:$0xf] %v279
    %335 = vrot.lane.b32.xlu0 %v277, 127
    %v336 = vpop.permute.xlu0 %335
    %337 = vrot.lane.b32.xlu0 %v279, 127
    %v338 = vpop.permute.xlu0 %337
    %v339 = vsel %vm180, %v336, %v338
    %v340 = vsel %vm180, %v338, %v336
    %v341 = vmul.f32 %v339, %v187
    %v342 = vmul.f32 %v340, %v191
    %v345 = vrot.slane %v341, 4
    %v346 = vrot.slane %v342, 4
    %349 = vst [vmem:[#allocation2 + $0x50] sm:$0xf0] %v345
    %350 = vst [vmem:[#allocation2 + $0x58] sm:$0xf0] %v346
    %351 = vrot.lane.b32.xlu0 %v277, 113
    %v352 = vpop.permute.xlu0 %351
    %353 = vrot.lane.b32.xlu0 %v279, 113
    %v354 = vpop.permute.xlu0 %353
    %v355 = vsel %vm208, %v352, %v354
    %v356 = vsel %vm208, %v354, %v352
    %v357 = vmul.f32 %v355, %v215
    %v358 = vmul.f32 %v356, %v219
    %359 = vst [vmem:[#allocation2 + $0x70] sm:$0xf] %v357
    %360 = vst [vmem:[#allocation2 + $0x78] sm:$0xf] %v358
    %361 = vrot.lane.b32.xlu0 %v277, 112
    %v362 = vpop.permute.xlu0 %361
    %363 = vrot.lane.b32.xlu0 %v279, 112
    %v364 = vpop.permute.xlu0 %363
    %v365 = vsel %vm230, %v362, %v364
    %v366 = vsel %vm230, %v364, %v362
    %v367 = vmul.f32 %v365, %v237
    %v368 = vmul.f32 %v366, %v241
    %v371 = vrot.slane %v367, 4
    %v372 = vrot.slane %v368, 4
    %375 = vst [vmem:[#allocation2 + $0x70] sm:$0xf0] %v371
    %376 = vst [vmem:[#allocation2 + $0x78] sm:$0xf0] %v372
    %377 = vrot.lane.b32.xlu0 %v277, 111
    %v378 = vpop.permute.xlu0 %377
    %379 = vrot.lane.b32.xlu0 %v279, 111
    %v380 = vpop.permute.xlu0 %379
    %v381 = vsel %vm258, %v378, %v380
    %v382 = vsel %vm258, %v380, %v378
    %v383 = vmul.f32 %v381, %v265
    %v384 = vmul.f32 %v382, %v269
    %385 = vst [vmem:[#allocation2 + $0x90] sm:$0xf] %v383
    %386 = vst [vmem:[#allocation2 + $0x98] sm:$0xf] %v384
    %v387 = vld [vmem:[%s1] sm:$0xff]
    %v388 = vld [vmem:[%s1 + $0x8] sm:$0xff]
    %v389 = vld [vmem:[%s1 + $0x10] sm:$0xff]
    %v390 = vld [vmem:[%s1 + $0x18] sm:$0xff]
    %v391 = vld [vmem:[#allocation2] sm:$0xff]
    %v392 = vld [vmem:[#allocation2 + $0x8] sm:$0xff]
    %v393 = vld [vmem:[#allocation2 + $0x10] sm:$0xff]
    %v394 = vld [vmem:[#allocation2 + $0x18] sm:$0xff]
    %v395 = vld [vmem:[#allocation2 + $0x20] sm:$0xff]
    %v396 = vld [vmem:[#allocation2 + $0x28] sm:$0xff]
    %v397 = vld [vmem:[#allocation2 + $0x30] sm:$0xff]
    %v398 = vld [vmem:[#allocation2 + $0x38] sm:$0xff]
    %v399 = vld [vmem:[#allocation2 + $0x40] sm:$0xff]
    %v400 = vld [vmem:[#allocation2 + $0x48] sm:$0xff]
    %v401 = vld [vmem:[#allocation2 + $0x50] sm:$0xff]
    %v402 = vld [vmem:[#allocation2 + $0x58] sm:$0xff]
    %v403 = vld [vmem:[#allocation2 + $0x60] sm:$0xff]
    %v404 = vld [vmem:[#allocation2 + $0x68] sm:$0xff]
    %v405 = vld [vmem:[#allocation2 + $0x70] sm:$0xff]
    %v406 = vld [vmem:[#allocation2 + $0x78] sm:$0xff]
    %v407 = vld [vmem:[#allocation2 + $0x80] sm:$0xf]
    %v408 = vld [vmem:[#allocation2 + $0x88] sm:$0xf]
    %v409 = vld [vmem:[#allocation2 + $0x90] sm:$0xf]
    %v410 = vld [vmem:[#allocation2 + $0x98] sm:$0xf]
    %v411 = vld [vmem:[%s2] sm:$0xff]
    %v412 = vld [vmem:[%s2 + $0x8] sm:$0xff]
    %v413 = vld [vmem:[%s2 + $0x10] sm:$0xff]
    %v414 = vld [vmem:[%s2 + $0x18] sm:$0xff]
    %416 = vset.pattern.permute.xlu0 0
    %417 = vperm.xlu0 %416, %v411
    %v418 = vpop.permute.xlu0 %417
    %421 = vset.pattern.permute.xlu0 0
    %422 = vperm.xlu0 %421, %v412
    %v423 = vpop.permute.xlu0 %422
    %426 = vset.pattern.permute.xlu0 0
    %427 = vperm.xlu0 %426, %v413
    %v428 = vpop.permute.xlu0 %427
    %431 = vset.pattern.permute.xlu0 0
    %432 = vperm.xlu0 %431, %v414
    %v433 = vpop.permute.xlu0 %432
    %vm435 = vcmask 293888
    %v437 = vsel %vm435, %v387, 0
    %v440 = vsel %vm435, %v388, 0
    %v443 = vsel %vm435, %v389, 0
    %v446 = vsel %vm435, %v390, 0
    %vm448 = vcmask 1043456
    %v450 = vsel %vm448, %v407, 0
    %v453 = vsel %vm448, %v408, 0
    %v456 = vsel %vm448, %v409, 0
    %v459 = vsel %vm448, %v410, 0
    %461 = vmatprep.subr.mxu0 0.0
    %462 = vmatpush1.msra.mxu0 0.0
    %463 = vmatprep.subr.mxu0 0.0
    %464 = vmatpush1.msra.mxu0 0.0
    %465 = vmatprep.subr.mxu0 0.0
    %466 = vmatpush1.msra.mxu0 0.0
    %467 = vmatprep.subr.mxu0 0.0
    %468 = vmatpush1.msra.mxu0 0.0
    %469 = vmatprep.subr.mxu0 0.0
    %470 = vmatpush1.msra.mxu0 0.0
    %471 = vmatprep.subr.mxu0 0.0
    %472 = vmatpush1.msra.mxu0 0.0
    %473 = vmatprep.subr.mxu0 0.0
    %474 = vmatpush1.msra.mxu0 0.0
    %475 = vmatprep.subr.mxu0 0.0
    %476 = vmatpush1.msra.mxu0 0.0
    %477 = vmatprep.subr.mxu0 0.0
    %478 = vmatpush1.msra.mxu0 0.0
    %479 = vmatprep.subr.mxu0 0.0
    %480 = vmatpush1.msra.mxu0 0.0
    %481 = vmatprep.subr.mxu0 0.0
    %482 = vmatpush1.msra.mxu0 0.0
    %483 = vmatprep.subr.mxu0 %v453
    %484 = vmatpush1.msra.mxu0 %v450
    %485 = vmatprep.subr.mxu0 %v404
    %486 = vmatpush1.msra.mxu0 %v403
    %487 = vmatprep.subr.mxu0 %v400
    %488 = vmatpush1.msra.mxu0 %v399
    %489 = vmatprep.subr.mxu0 %v396
    %490 = vmatpush1.msra.mxu0 %v395
    %491 = vmatprep.subr.mxu0 %v392
    %492 = vmatpush1.msra.mxu0 %v391
    %493 = vmatprep.subr.mxu0 0.0
    %494 = vmatpush2.msra.mxu0 0.0
    %495 = vmatprep.subr.mxu0 0.0
    %496 = vmatpush2.msra.mxu0 0.0
    %497 = vmatprep.subr.mxu0 0.0
    %498 = vmatpush2.msra.mxu0 0.0
    %499 = vmatprep.subr.mxu0 0.0
    %500 = vmatpush2.msra.mxu0 0.0
    %501 = vmatprep.subr.mxu0 0.0
    %502 = vmatpush2.msra.mxu0 0.0
    %503 = vmatprep.subr.mxu0 0.0
    %504 = vmatpush2.msra.mxu0 0.0
    %505 = vmatprep.subr.mxu0 0.0
    %506 = vmatpush2.msra.mxu0 0.0
    %507 = vmatprep.subr.mxu0 0.0
    %508 = vmatpush2.msra.mxu0 0.0
    %509 = vmatprep.subr.mxu0 0.0
    %510 = vmatpush2.msra.mxu0 0.0
    %511 = vmatprep.subr.mxu0 0.0
    %512 = vmatpush2.msra.mxu0 0.0
    %513 = vmatprep.subr.mxu0 0.0
    %514 = vmatpush2.msra.mxu0 0.0
    %515 = vmatprep.subr.mxu0 0.0
    %516 = vmatpush2.msra.mxu0 0.0
    %517 = vmatprep.subr.mxu0 0.0
    %518 = vmatpush2.msra.mxu0 0.0
    %519 = vmatprep.subr.mxu0 0.0
    %520 = vmatpush2.msra.mxu0 0.0
    %521 = vmatprep.subr.mxu0 0.0
    %522 = vmatpush2.msra.mxu0 0.0
    %523 = vmatprep.subr.mxu0 0.0
    %524 = vmatpush2.msra.mxu0 0.0
    %525 = vmatprep.mubr.f32.mxu0 0.0
    %526 = vmatmul.mubr.f32.gmra.mxu0 %v437
    %v527 = vpop.f32.mrf.mxu0
    %v528 = vadd.f32 %v418, %v527
    %v529 = vpop.f32.mrf.mxu0
    %v530 = vadd.f32 %v418, %v529
    %531 = vmatprep.mubr.f32.mxu0 0.0
    %532 = vmatmul.mubr.f32.gmra.mxu0 %v440
    %v533 = vpop.f32.mrf.mxu0
    %v534 = vadd.f32 %v423, %v533
    %v535 = vpop.f32.mrf.mxu0
    %v536 = vadd.f32 %v423, %v535
    %537 = vmatprep.mubr.f32.mxu0 0.0
    %538 = vmatmul.mubr.f32.gmra.mxu0 %v443
    %v539 = vpop.f32.mrf.mxu0
    %v540 = vadd.f32 %v428, %v539
    %v541 = vpop.f32.mrf.mxu0
    %v542 = vadd.f32 %v428, %v541
    %543 = vmatprep.mubr.f32.mxu0 0.0
    %544 = vmatmul.mubr.f32.gmra.mxu0 %v446
    %v545 = vpop.f32.mrf.mxu0
    %v546 = vadd.f32 %v433, %v545
    %v547 = vpop.f32.mrf.mxu0
    %v548 = vadd.f32 %v433, %v547
    %549 = vdwg.mxu0
    %550 = vmatprep.subr.mxu0 0.0
    %551 = vmatpush1.msra.mxu0 0.0
    %552 = vmatprep.subr.mxu0 0.0
    %553 = vmatpush1.msra.mxu0 0.0
    %554 = vmatprep.subr.mxu0 0.0
    %555 = vmatpush1.msra.mxu0 0.0
    %556 = vmatprep.subr.mxu0 0.0
    %557 = vmatpush1.msra.mxu0 0.0
    %558 = vmatprep.subr.mxu0 0.0
    %559 = vmatpush1.msra.mxu0 0.0
    %560 = vmatprep.subr.mxu0 0.0
    %561 = vmatpush1.msra.mxu0 0.0
    %562 = vmatprep.subr.mxu0 0.0
    %563 = vmatpush1.msra.mxu0 0.0
    %564 = vmatprep.subr.mxu0 0.0
    %565 = vmatpush1.msra.mxu0 0.0
    %566 = vmatprep.subr.mxu0 0.0
    %567 = vmatpush1.msra.mxu0 0.0
    %568 = vmatprep.subr.mxu0 0.0
    %569 = vmatpush1.msra.mxu0 0.0
    %570 = vmatprep.subr.mxu0 0.0
    %571 = vmatpush1.msra.mxu0 0.0
    %572 = vmatprep.subr.mxu0 %v459
    %573 = vmatpush1.msra.mxu0 %v456
    %574 = vmatprep.subr.mxu0 %v406
    %575 = vmatpush1.msra.mxu0 %v405
    %576 = vmatprep.subr.mxu0 %v402
    %577 = vmatpush1.msra.mxu0 %v401
    %578 = vmatprep.subr.mxu0 %v398
    %579 = vmatpush1.msra.mxu0 %v397
    %580 = vmatprep.subr.mxu0 %v394
    %581 = vmatpush1.msra.mxu0 %v393
    %582 = vmatprep.subr.mxu0 0.0
    %583 = vmatpush2.msra.mxu0 0.0
    %584 = vmatprep.subr.mxu0 0.0
    %585 = vmatpush2.msra.mxu0 0.0
    %586 = vmatprep.subr.mxu0 0.0
    %587 = vmatpush2.msra.mxu0 0.0
    %588 = vmatprep.subr.mxu0 0.0
    %589 = vmatpush2.msra.mxu0 0.0
    %590 = vmatprep.subr.mxu0 0.0
    %591 = vmatpush2.msra.mxu0 0.0
    %592 = vmatprep.subr.mxu0 0.0
    %593 = vmatpush2.msra.mxu0 0.0
    %594 = vmatprep.subr.mxu0 0.0
    %595 = vmatpush2.msra.mxu0 0.0
    %596 = vmatprep.subr.mxu0 0.0
    %597 = vmatpush2.msra.mxu0 0.0
    %598 = vmatprep.subr.mxu0 0.0
    %599 = vmatpush2.msra.mxu0 0.0
    %600 = vmatprep.subr.mxu0 0.0
    %601 = vmatpush2.msra.mxu0 0.0
    %602 = vmatprep.subr.mxu0 0.0
    %603 = vmatpush2.msra.mxu0 0.0
    %604 = vmatprep.subr.mxu0 0.0
    %605 = vmatpush2.msra.mxu0 0.0
    %606 = vmatprep.subr.mxu0 0.0
    %607 = vmatpush2.msra.mxu0 0.0
    %608 = vmatprep.subr.mxu0 0.0
    %609 = vmatpush2.msra.mxu0 0.0
    %610 = vmatprep.subr.mxu0 0.0
    %611 = vmatpush2.msra.mxu0 0.0
    %612 = vmatprep.subr.mxu0 0.0
    %613 = vmatpush2.msra.mxu0 0.0
    %614 = vmatprep.mubr.f32.mxu0 0.0
    %615 = vmatmul.mubr.f32.gmra.mxu0 %v437
    %v616 = vpop.f32.mrf.mxu0
    %v617 = vadd.f32 %v418, %v616
    %v618 = vpop.f32.mrf.mxu0
    %v619 = vadd.f32 %v418, %v618
    %620 = vmatprep.mubr.f32.mxu0 0.0
    %621 = vmatmul.mubr.f32.gmra.mxu0 %v440
    %v622 = vpop.f32.mrf.mxu0
    %v623 = vadd.f32 %v423, %v622
    %v624 = vpop.f32.mrf.mxu0
    %v625 = vadd.f32 %v423, %v624
    %626 = vmatprep.mubr.f32.mxu0 0.0
    %627 = vmatmul.mubr.f32.gmra.mxu0 %v443
    %v628 = vpop.f32.mrf.mxu0
    %v629 = vadd.f32 %v428, %v628
    %v630 = vpop.f32.mrf.mxu0
    %v631 = vadd.f32 %v428, %v630
    %632 = vmatprep.mubr.f32.mxu0 0.0
    %633 = vmatmul.mubr.f32.gmra.mxu0 %v446
    %v634 = vpop.f32.mrf.mxu0
    %v635 = vadd.f32 %v433, %v634
    %v636 = vpop.f32.mrf.mxu0
    %v637 = vadd.f32 %v433, %v636
    %638 = vdwg.mxu0
    %vm639 = vcmp.gt.f32.partialorder %v528, 0.0
    %vm640 = vcmp.gt.f32.partialorder %v530, 0.0
    %vm641 = vcmp.gt.f32.partialorder %v617, 0.0
    %vm642 = vcmp.gt.f32.partialorder %v619, 0.0
    %vm643 = vcmp.gt.f32.partialorder %v534, 0.0
    %vm644 = vcmp.gt.f32.partialorder %v536, 0.0
    %vm645 = vcmp.gt.f32.partialorder %v623, 0.0
    %vm646 = vcmp.gt.f32.partialorder %v625, 0.0
    %vm647 = vcmp.gt.f32.partialorder %v540, 0.0
    %vm648 = vcmp.gt.f32.partialorder %v542, 0.0
    %vm649 = vcmp.gt.f32.partialorder %v629, 0.0
    %vm650 = vcmp.gt.f32.partialorder %v631, 0.0
    %vm651 = vcmp.gt.f32.partialorder %v546, 0.0
    %vm652 = vcmp.gt.f32.partialorder %v548, 0.0
    %vm653 = vcmp.gt.f32.partialorder %v635, 0.0
    %vm654 = vcmp.gt.f32.partialorder %v637, 0.0
    %v655 = vmul.f32 %v528, 0.01
    %v656 = vmul.f32 %v530, 0.01
    %v657 = vmul.f32 %v617, 0.01
    %v658 = vmul.f32 %v619, 0.01
    %v659 = vmul.f32 %v534, 0.01
    %v660 = vmul.f32 %v536, 0.01
    %v661 = vmul.f32 %v623, 0.01
    %v662 = vmul.f32 %v625, 0.01
    %v663 = vmul.f32 %v540, 0.01
    %v664 = vmul.f32 %v542, 0.01
    %v665 = vmul.f32 %v629, 0.01
    %v666 = vmul.f32 %v631, 0.01
    %v667 = vmul.f32 %v546, 0.01
    %v668 = vmul.f32 %v548, 0.01
    %v669 = vmul.f32 %v635, 0.01
    %v670 = vmul.f32 %v637, 0.01
    %v671 = vsel %vm639, %v528, %v655
    %v672 = vsel %vm640, %v530, %v656
    %v673 = vsel %vm641, %v617, %v657
    %v674 = vsel %vm642, %v619, %v658
    %v675 = vsel %vm643, %v534, %v659
    %v676 = vsel %vm644, %v536, %v660
    %v677 = vsel %vm645, %v623, %v661
    %v678 = vsel %vm646, %v625, %v662
    %v679 = vsel %vm647, %v540, %v663
    %v680 = vsel %vm648, %v542, %v664
    %v681 = vsel %vm649, %v629, %v665
    %v682 = vsel %vm650, %v631, %v666
    %v683 = vsel %vm651, %v546, %v667
    %v684 = vsel %vm652, %v548, %v668
    %v685 = vsel %vm653, %v635, %v669
    %v686 = vsel %vm654, %v637, %v670
    %v687 = vld [vmem:[#allocation6] sm:$0xff]
    %vm688 = vcmask 261120
    %v690 = vsel %vm688, %v687, 0
    %692 = vmatprep.subr.mxu0 0.0
    %693 = vmatpush1.msra.mxu0 0.0
    %694 = vmatprep.subr.mxu0 0.0
    %695 = vmatpush1.msra.mxu0 0.0
    %696 = vmatprep.subr.mxu0 0.0
    %697 = vmatpush1.msra.mxu0 0.0
    %698 = vmatprep.subr.mxu0 0.0
    %699 = vmatpush1.msra.mxu0 0.0
    %700 = vmatprep.subr.mxu0 0.0
    %701 = vmatpush1.msra.mxu0 0.0
    %702 = vmatprep.subr.mxu0 0.0
    %703 = vmatpush1.msra.mxu0 0.0
    %704 = vmatprep.subr.mxu0 0.0
    %705 = vmatpush1.msra.mxu0 0.0
    %706 = vmatprep.subr.mxu0 0.0
    %707 = vmatpush1.msra.mxu0 0.0
    %708 = vmatprep.subr.mxu0 0.0
    %709 = vmatpush1.msra.mxu0 0.0
    %710 = vmatprep.subr.mxu0 0.0
    %711 = vmatpush1.msra.mxu0 0.0
    %712 = vmatprep.subr.mxu0 0.0
    %713 = vmatpush1.msra.mxu0 0.0
    %714 = vmatprep.subr.mxu0 0.0
    %715 = vmatpush1.msra.mxu0 0.0
    %716 = vmatprep.subr.mxu0 %v684
    %717 = vmatpush1.msra.mxu0 %v683
    %718 = vmatprep.subr.mxu0 %v680
    %719 = vmatpush1.msra.mxu0 %v679
    %720 = vmatprep.subr.mxu0 %v676
    %721 = vmatpush1.msra.mxu0 %v675
    %722 = vmatprep.subr.mxu0 %v672
    %723 = vmatpush1.msra.mxu0 %v671
    %724 = vmatprep.subr.mxu0 0.0
    %725 = vmatpush2.msra.mxu0 0.0
    %726 = vmatprep.subr.mxu0 0.0
    %727 = vmatpush2.msra.mxu0 0.0
    %728 = vmatprep.subr.mxu0 0.0
    %729 = vmatpush2.msra.mxu0 0.0
    %730 = vmatprep.subr.mxu0 0.0
    %731 = vmatpush2.msra.mxu0 0.0
    %732 = vmatprep.subr.mxu0 0.0
    %733 = vmatpush2.msra.mxu0 0.0
    %734 = vmatprep.subr.mxu0 0.0
    %735 = vmatpush2.msra.mxu0 0.0
    %736 = vmatprep.subr.mxu0 0.0
    %737 = vmatpush2.msra.mxu0 0.0
    %738 = vmatprep.subr.mxu0 0.0
    %739 = vmatpush2.msra.mxu0 0.0
    %740 = vmatprep.subr.mxu0 0.0
    %741 = vmatpush2.msra.mxu0 0.0
    %742 = vmatprep.subr.mxu0 0.0
    %743 = vmatpush2.msra.mxu0 0.0
    %744 = vmatprep.subr.mxu0 0.0
    %745 = vmatpush2.msra.mxu0 0.0
    %746 = vmatprep.subr.mxu0 0.0
    %747 = vmatpush2.msra.mxu0 0.0
    %748 = vmatprep.subr.mxu0 0.0
    %749 = vmatpush2.msra.mxu0 0.0
    %750 = vmatprep.subr.mxu0 0.0
    %751 = vmatpush2.msra.mxu0 0.0
    %752 = vmatprep.subr.mxu0 0.0
    %753 = vmatpush2.msra.mxu0 0.0
    %754 = vmatprep.subr.mxu0 0.0
    %755 = vmatpush2.msra.mxu0 0.0
    %756 = vmatprep.mubr.f32.mxu0 0.0
    %757 = vmatmul.mubr.f32.gmra.mxu0 %v690
    %v758 = vpop.f32.mrf.mxu0
    %v759 = vadd.f32 0.0, %v758
    %v760 = vpop.f32.mrf.mxu0
    %v761 = vadd.f32 0.0, %v760
    %762 = vdwg.mxu0
    %763 = vmatprep.subr.mxu0 0.0
    %764 = vmatpush1.msra.mxu0 0.0
    %765 = vmatprep.subr.mxu0 0.0
    %766 = vmatpush1.msra.mxu0 0.0
    %767 = vmatprep.subr.mxu0 0.0
    %768 = vmatpush1.msra.mxu0 0.0
    %769 = vmatprep.subr.mxu0 0.0
    %770 = vmatpush1.msra.mxu0 0.0
    %771 = vmatprep.subr.mxu0 0.0
    %772 = vmatpush1.msra.mxu0 0.0
    %773 = vmatprep.subr.mxu0 0.0
    %774 = vmatpush1.msra.mxu0 0.0
    %775 = vmatprep.subr.mxu0 0.0
    %776 = vmatpush1.msra.mxu0 0.0
    %777 = vmatprep.subr.mxu0 0.0
    %778 = vmatpush1.msra.mxu0 0.0
    %779 = vmatprep.subr.mxu0 0.0
    %780 = vmatpush1.msra.mxu0 0.0
    %781 = vmatprep.subr.mxu0 0.0
    %782 = vmatpush1.msra.mxu0 0.0
    %783 = vmatprep.subr.mxu0 0.0
    %784 = vmatpush1.msra.mxu0 0.0
    %785 = vmatprep.subr.mxu0 0.0
    %786 = vmatpush1.msra.mxu0 0.0
    %787 = vmatprep.subr.mxu0 %v686
    %788 = vmatpush1.msra.mxu0 %v685
    %789 = vmatprep.subr.mxu0 %v682
    %790 = vmatpush1.msra.mxu0 %v681
    %791 = vmatprep.subr.mxu0 %v678
    %792 = vmatpush1.msra.mxu0 %v677
    %793 = vmatprep.subr.mxu0 %v674
    %794 = vmatpush1.msra.mxu0 %v673
    %795 = vmatprep.subr.mxu0 0.0
    %796 = vmatpush2.msra.mxu0 0.0
    %797 = vmatprep.subr.mxu0 0.0
    %798 = vmatpush2.msra.mxu0 0.0
    %799 = vmatprep.subr.mxu0 0.0
    %800 = vmatpush2.msra.mxu0 0.0
    %801 = vmatprep.subr.mxu0 0.0
    %802 = vmatpush2.msra.mxu0 0.0
    %803 = vmatprep.subr.mxu0 0.0
    %804 = vmatpush2.msra.mxu0 0.0
    %805 = vmatprep.subr.mxu0 0.0
    %806 = vmatpush2.msra.mxu0 0.0
    %807 = vmatprep.subr.mxu0 0.0
    %808 = vmatpush2.msra.mxu0 0.0
    %809 = vmatprep.subr.mxu0 0.0
    %810 = vmatpush2.msra.mxu0 0.0
    %811 = vmatprep.subr.mxu0 0.0
    %812 = vmatpush2.msra.mxu0 0.0
    %813 = vmatprep.subr.mxu0 0.0
    %814 = vmatpush2.msra.mxu0 0.0
    %815 = vmatprep.subr.mxu0 0.0
    %816 = vmatpush2.msra.mxu0 0.0
    %817 = vmatprep.subr.mxu0 0.0
    %818 = vmatpush2.msra.mxu0 0.0
    %819 = vmatprep.subr.mxu0 0.0
    %820 = vmatpush2.msra.mxu0 0.0
    %821 = vmatprep.subr.mxu0 0.0
    %822 = vmatpush2.msra.mxu0 0.0
    %823 = vmatprep.subr.mxu0 0.0
    %824 = vmatpush2.msra.mxu0 0.0
    %825 = vmatprep.subr.mxu0 0.0
    %826 = vmatpush2.msra.mxu0 0.0
    %827 = vmatprep.mubr.f32.mxu0 0.0
    %828 = vmatmul.mubr.f32.gmra.mxu0 %v690
    %v829 = vpop.f32.mrf.mxu0
    %v830 = vadd.f32 0.0, %v829
    %v831 = vpop.f32.mrf.mxu0
    %v832 = vadd.f32 0.0, %v831
    %833 = vdwg.mxu0
    %834 = vst [vmem:[#allocation9] sm:$0xff] %v759
    %835 = vst [vmem:[#allocation9 + $0x8] sm:$0xff] %v761
    %s836 = scalar_lea.vmem [#allocation9], 16
    %837 = vst [vmem:[%s836] sm:$0xff] %v830
    %838 = vst [vmem:[%s836 + $0x8] sm:$0xff] %v832
    // Predicated region
    $region34: #{tpu_custom_call.1} parent=1 // pred_check
      _
    $region35: #{tpu_custom_call.1} parent=1 // pred_check_branch
      %840 = sbr.rel (0) target = $region37
    $region36: #{tpu_custom_call.1} parent=1 // pred_region
      %s842 = ssub.s32 512, 512
      %843 = vsyncadd [#allocation5], %s842
      %s844 = sshll.u32 [#allocation9], 4
      %s845 = int_to_ptr.vmem [resolvable:$true] %s844
      %850 = dma.vmem_to_hbm [thread:$0]  %s845, 512, %s5, [#allocation5], 256, 256, 16
    $region37: #{tpu_custom_call.1} parent=1 // pred_fallthru
      _
    // Predicated region
    $region38: #{tpu_custom_call.1} parent=1 // pred_check
      _
    $region39: #{tpu_custom_call.1} parent=1 // pred_check_branch
      %852 = sbr.rel (0) target = $region41
    $region40: #{tpu_custom_call.1} parent=1 // pred_region
      %853 = dma.done [#allocation5], 512
    $region41: #{tpu_custom_call.1} parent=1 // pred_fallthru
      _
    %854 = vsyncpa [#allocation4], 1
    %855 = vsyncpa [#allocation7], 1
    %856 = vsyncpa [#allocation5], 1

</llo_original>
